<compile_context>
chip_gen: v6e
topology: v6e:2x2x1
jax: 0.10.0
libtpu: 0.0.40
codegen_flags: <defaults>
</compile_context>

<pallas_src>
import functools

import numpy as np

import jax
import jax.numpy as jnp
from jax import lax
from jax.experimental import pallas as pl
from jax.experimental.pallas import tpu as pltpu


# dtype fed to the MXU (accumulation is always f32).
_MXU_DTYPE = jnp.bfloat16


def _hw_budgets():
    """(vmem_limit_bytes, linear_tile_target) chosen per TPU generation."""
    cap = None
    try:
        cap = pltpu.get_tpu_info().vmem_capacity_bytes
    except Exception:
        cap = None
    if cap is None:
        cap = 128 * 1024 * 1024
    if cap >= 96 * 1024 * 1024:            # v5e / v6e: 128 MiB physical VMEM
        return 64 * 1024 * 1024, 1024
    return 40 * 1024 * 1024, 512           # v7x: 64 MiB physical VMEM


_VMEM_LIMIT, _LIN_TILE = _hw_budgets()


def _pick_tile(dim, target, align):
    """Largest tile <= target that divides `dim` and is `align`-aligned.

    Falls back to the full extent (always a legal block shape).
    """
    if dim <= target:
        return dim
    t = (target // align) * align
    while t >= align:
        if dim % t == 0:
            return t
        t -= align
    # TODO(synk): fallback = full extent; for awkward prime-ish dims this can
    # exceed the intended tile budget (pad inputs upstream if that matters).
    return dim


# ---------------------------------------------------------------------------
# Tiled linear kernel:  o = x @ W (+ b), bf16 MXU inputs, f32 accumulation.
# When the output dtype is f32 the resident output block is the accumulator
# (no extra VMEM scratch).
# ---------------------------------------------------------------------------
def _make_linear_kernel(has_bias, acc_in_out):
    def kernel(*refs):
        idx = 0
        x_ref = refs[idx]; idx += 1
        w_ref = refs[idx]; idx += 1
        b_ref = None
        if has_bias:
            b_ref = refs[idx]; idx += 1
        o_ref = refs[idx]; idx += 1
        acc_ref = o_ref if acc_in_out else refs[idx]

        k = pl.program_id(2)

        @pl.when(k == 0)
        def _init():
            acc_ref[...] = jnp.zeros_like(acc_ref)

        acc_ref[...] += jnp.dot(x_ref[...], w_ref[...],
                                preferred_element_type=jnp.float32)

        if has_bias or not acc_in_out:
            @pl.when(k == pl.num_programs(2) - 1)
            def _finalize():
                out = acc_ref[...]
                if has_bias:
                    out = out + b_ref[...].astype(jnp.float32)
                o_ref[...] = out.astype(o_ref.dtype)

    return kernel


def linear_pallas(x2d, w, b=None, *, out_dtype=None,
                  tm_target=None, tn_target=None, tk_target=512):
    """x2d: (M, K), w: (K, N), optional b: (N,) -> (M, N) in out_dtype."""
    M, K = x2d.shape
    K2, N = w.shape
    assert K == K2
    out_dtype = x2d.dtype if out_dtype is None else out_dtype

    tm_target = _LIN_TILE if tm_target is None else tm_target
    tn_target = _LIN_TILE if tn_target is None else tn_target

    # Sublane dims need %8 (or full extent), lane dims need %128 (or full).
    tm = _pick_tile(M, tm_target, 8)
    tn = _pick_tile(N, tn_target, 128)
    tk = _pick_tile(K, tk_target, 128)
    grid = (M // tm, N // tn, K // tk)

    has_bias = b is not None
    acc_in_out = np.dtype(out_dtype) == np.dtype(np.float32)

    in_specs = [
        pl.BlockSpec((tm, tk), lambda i, j, k: (i, k)),
        pl.BlockSpec((tk, tn), lambda i, j, k: (k, j)),
    ]
    args = [x2d, w]
    if has_bias:
        in_specs.append(pl.BlockSpec((1, tn), lambda i, j, k: (0, j)))
        args.append(b.reshape(1, N))

    scratch_shapes = [] if acc_in_out else [pltpu.VMEM((tm, tn), jnp.float32)]

    isz = lambda dt: np.dtype(dt).itemsize
    bytes_accessed = (isz(x2d.dtype) * M * K * (N // tn)
                      + isz(w.dtype) * K * N * (M // tm)
                      + isz(out_dtype) * M * N
                      + (isz(b.dtype) * N if has_bias else 0))

    return pl.pallas_call(
        _make_linear_kernel(has_bias, acc_in_out),
        out_shape=jax.ShapeDtypeStruct((M, N), out_dtype),
        grid=grid,
        in_specs=in_specs,
        out_specs=pl.BlockSpec((tm, tn), lambda i, j, k: (i, j)),
        scratch_shapes=scratch_shapes,
        compiler_params=pltpu.CompilerParams(
            dimension_semantics=("parallel", "parallel", "arbitrary"),
            vmem_limit_bytes=_VMEM_LIMIT,
        ),
        cost_estimate=pl.CostEstimate(
            flops=2 * M * N * K,
            transcendentals=0,
            bytes_accessed=bytes_accessed,
        ),
    )(*args)


# ---------------------------------------------------------------------------
# Flash attention kernel. Inputs are (B*H, seq, dim_head); grid =
# (B*H, q_tiles, kv_tiles) with the KV axis last ("arbitrary"). Online
# softmax state (m, l, acc) lives in f32 VMEM scratch and persists across the
# KV axis for each (bh, q_tile).
# ---------------------------------------------------------------------------
def _flash_kernel(q_ref, k_ref, v_ref, o_ref, m_sc, l_sc, acc_sc, *, scale):
    ki = pl.program_id(2)

    @pl.when(ki == 0)
    def _init():
        m_sc[...] = jnp.full_like(m_sc, -jnp.inf)
        l_sc[...] = jnp.zeros_like(l_sc)
        acc_sc[...] = jnp.zeros_like(acc_sc)

    # Fold the softmax scale into q (tq*D multiplies, not tq*tkv).
    q = q_ref[...] * scale                                  # (tq, D) bf16
    k = k_ref[...]                                          # (tkv, D) bf16
    # QK^T via contraction on the last dim of both operands (no k.T / XLU).
    s = lax.dot_general(q, k, (((1,), (1,)), ((), ())),
                        preferred_element_type=jnp.float32)  # (tq, tkv) f32

    m_prev = m_sc[...]
    m_new = jnp.maximum(m_prev, jnp.max(s, axis=-1, keepdims=True))
    alpha = jnp.exp(m_prev - m_new)
    p = jnp.exp(s - m_new)
    l_sc[...] = alpha * l_sc[...] + jnp.sum(p, axis=-1, keepdims=True)
    acc_sc[...] = alpha * acc_sc[...] + jnp.dot(
        p.astype(v_ref.dtype), v_ref[...], preferred_element_type=jnp.float32)
    m_sc[...] = m_new

    @pl.when(ki == pl.num_programs(2) - 1)
    def _finalize():
        o_ref[...] = (acc_sc[...] * pl.reciprocal(l_sc[...], approx=True)
                      ).astype(o_ref.dtype)


def flash_attention(q, k, v, *, scale, tq_target=256, tkv_target=512):
    """q: (BH, N, D), k/v: (BH, M, D) -> (BH, N, D) in q.dtype."""
    BH, N, D = q.shape
    BH2, M, D2 = k.shape
    assert BH == BH2 and D == D2 and v.shape == k.shape

    tq = _pick_tile(N, tq_target, 8)
    tkv = _pick_tile(M, tkv_target, 8)
    grid = (BH, N // tq, M // tkv)

    kernel = functools.partial(_flash_kernel, scale=scale)
    isz = np.dtype(q.dtype).itemsize
    bytes_accessed = isz * (BH * N * D                     # q
                            + 2 * BH * M * D * (N // tq)   # k, v per q tile
                            + BH * N * D)                  # out

    return pl.pallas_call(
        kernel,
        out_shape=jax.ShapeDtypeStruct((BH, N, D), q.dtype),
        grid=grid,
        in_specs=[
            pl.BlockSpec((None, tq, D), lambda b, qi, ki: (b, qi, 0)),
            pl.BlockSpec((None, tkv, D), lambda b, qi, ki: (b, ki, 0)),
            pl.BlockSpec((None, tkv, D), lambda b, qi, ki: (b, ki, 0)),
        ],
        out_specs=pl.BlockSpec((None, tq, D), lambda b, qi, ki: (b, qi, 0)),
        scratch_shapes=[
            pltpu.VMEM((tq, 1), jnp.float32),    # m (running max)
            pltpu.VMEM((tq, 1), jnp.float32),    # l (running denominator)
            pltpu.VMEM((tq, D), jnp.float32),    # acc (running numerator)
        ],
        compiler_params=pltpu.CompilerParams(
            dimension_semantics=("parallel", "parallel", "arbitrary"),
            vmem_limit_bytes=_VMEM_LIMIT,
        ),
        cost_estimate=pl.CostEstimate(
            flops=4 * BH * N * M * D,
            transcendentals=BH * N * M,
            bytes_accessed=bytes_accessed,
        ),
    )(q, k, v)


# ---------------------------------------------------------------------------
# CrossAttention forward (eval mode: dropout=0.0, no mask, no
# additional_tokens, no crossframe repeat).
# ---------------------------------------------------------------------------
def cross_attention_forward(x, context, params, *, heads, dim_head):
    B, N, query_dim = x.shape
    self_attn = context is None
    ctx = x if self_attn else context
    M = ctx.shape[1]
    inner = heads * dim_head
    scale = dim_head ** (-0.5)   # default scale of F.scaled_dot_product_attention

    x2 = x.reshape(B * N, query_dim).astype(_MXU_DTYPE)

    if self_attn:
        # One fused projection: x @ [wq | wk | wv]  (x streamed from HBM once).
        w_qkv = jnp.concatenate([params["wq"], params["wk"], params["wv"]], axis=1)
        b_qkv = (jnp.concatenate([params["bq"], params["bk"], params["bv"]])
                 if params["bq"] is not None else None)
        qkv = linear_pallas(x2, w_qkv, b_qkv, out_dtype=_MXU_DTYPE)   # (B*N, 3*inner)
        q2 = qkv[:, :inner]
        k2 = qkv[:, inner:2 * inner]
        v2 = qkv[:, 2 * inner:]
    else:
        c2 = ctx.reshape(B * M, ctx.shape[-1]).astype(_MXU_DTYPE)
        q2 = linear_pallas(x2, params["wq"], params["bq"], out_dtype=_MXU_DTYPE)
        # Fused K|V projection: context streamed from HBM once.
        w_kv = jnp.concatenate([params["wk"], params["wv"]], axis=1)
        b_kv = (jnp.concatenate([params["bk"], params["bv"]])
                if params["bk"] is not None else None)
        kv = linear_pallas(c2, w_kv, b_kv, out_dtype=_MXU_DTYPE)      # (B*M, 2*inner)
        k2 = kv[:, :inner]
        v2 = kv[:, inner:]

    # One-time XLA reshape/transpose to (B*heads, seq, dim_head): avoids
    # lane-unaligned per-head slices and head-concat relayouts in-kernel.
    def to_bh(t, S):
        return (t.reshape(B, S, heads, dim_head)
                 .transpose(0, 2, 1, 3)
                 .reshape(B * heads, S, dim_head))

    o_bh = flash_attention(to_bh(q2, N), to_bh(k2, M), to_bh(v2, M), scale=scale)
    o2 = (o_bh.reshape(B, heads, N, dim_head)
              .transpose(0, 2, 1, 3)
              .reshape(B * N, inner))

    # to_out[0] Linear (Pallas); Dropout(p=0.0) is identity.
    out = linear_pallas(o2, params["wo"], params["bo"], out_dtype=x.dtype)
    return out.reshape(B, N, query_dim)

    # TODO(synk): attn_mask / additional_tokens / n_times_crossframe_attn_in_self
    # paths are not implemented (module defaults: None / None / 0).


# ---------------------------------------------------------------------------
# Deterministic parameter init (synthetic; matches nn.Linear shapes).
# Weights stored (in_features, out_features) in bf16 so kernels compute
# x @ W + b without any in-kernel casts or f32 weight loads.
# ---------------------------------------------------------------------------
def init_params(key, query_dim, context_dim, heads, dim_head, qkv_bias=False):
    inner_dim = heads * dim_head
    ks = jax.random.split(key, 4)

    def w(k, fan_in, fan_out):
        return ((jax.random.normal(k, (fan_in, fan_out), jnp.float32)
                 / jnp.sqrt(fan_in)).astype(_MXU_DTYPE))

    return {
        "wq": w(ks[0], query_dim, inner_dim),
        "wk": w(ks[1], context_dim, inner_dim),
        "wv": w(ks[2], context_dim, inner_dim),
        "wo": w(ks[3], inner_dim, query_dim),
        # qkv_bias=False (default) -> no bias; to_out Linear has bias=True
        "bq": (jnp.zeros((inner_dim,), jnp.float32) if qkv_bias else None),
        "bk": (jnp.zeros((inner_dim,), jnp.float32) if qkv_bias else None),
        "bv": (jnp.zeros((inner_dim,), jnp.float32) if qkv_bias else None),
        "bo": jnp.full((query_dim,), 0.01, jnp.float32),
    }


# ---------------------------------------------------------------------------
def _reference(x, context, params, *, heads, dim_head):
    """Pure-JAX f32 reference (PyTorch semantics) for sanity check."""
    if context is None:
        context = x
    B, N, _ = x.shape
    M = context.shape[1]
    inner = heads * dim_head
    scale = dim_head ** (-0.5)
    f32 = lambda t: t.astype(jnp.float32)
    q = x @ f32(params["wq"])
    k = context @ f32(params["wk"])
    v = context @ f32(params["wv"])
    if params["bq"] is not None:
        q, k, v = q + params["bq"], k + params["bk"], v + params["bv"]
    q = q.reshape(B, N, heads, dim_head).transpose(0, 2, 1, 3)
    k = k.reshape(B, M, heads, dim_head).transpose(0, 2, 1, 3)
    v = v.reshape(B, M, heads, dim_head).transpose(0, 2, 1, 3)
    s = jnp.einsum("bhnd,bhmd->bhnm", q, k) * scale
    p = jax.nn.softmax(s, axis=-1)
    o = jnp.einsum("bhnm,bhmd->bhnd", p, v)
    o = o.transpose(0, 2, 1, 3).reshape(B, N, inner)
    return o @ f32(params["wo"]) + params["bo"]


if __name__ == "__main__":
    # Small shapes consistent with the module's forward.
    B, N, M = 2, 16, 8            # batch, query seq len, context seq len
    query_dim, context_dim = 32, 32
    heads, dim_head = 2, 64       # inner_dim = 128

    key = jax.random.PRNGKey(0)
    kx, kc, kp = jax.random.split(key, 3)
    x = jax.random.normal(kx, (B, N, query_dim), jnp.float32)
    context = jax.random.normal(kc, (B, M, context_dim), jnp.float32)
    params = init_params(kp, query_dim, context_dim, heads, dim_head)

    # Cross-attention path (fused K|V projection).
    out = cross_attention_forward(x, context, params,
                                  heads=heads, dim_head=dim_head)
    out = jax.block_until_ready(out)
    ref = _reference(x, context, params, heads=heads, dim_head=dim_head)
    assert out.shape == (B, N, query_dim)
    # Kernel uses bf16 MXU operands (f32 accumulation) and an approx
    # reciprocal for the softmax denominator; compare with bf16 tolerance.
    assert jnp.allclose(out, ref, atol=5e-2, rtol=5e-2), (
        float(jnp.max(jnp.abs(out - ref))))

    # Self-attention path (context=None -> fused Q|K|V projection).
    out_s = cross_attention_forward(x, None, params,
                                    heads=heads, dim_head=dim_head)
    out_s = jax.block_until_ready(out_s)
    ref_s = _reference(x, None, params, heads=heads, dim_head=dim_head)
    assert jnp.allclose(out_s, ref_s, atol=5e-2, rtol=5e-2), (
        float(jnp.max(jnp.abs(out_s - ref_s))))

    print("KERNEL_OK")
</pallas_src>

<mosaic_0001>
module attributes {stable_mosaic.version = 11 : i64} {
  func.func @kernel(%arg0: i32, %arg1: i32, %arg2: i32, %arg3: memref<32x32xbf16, #tpu.memory_space<vmem>>, %arg4: memref<32x128xbf16, #tpu.memory_space<vmem>>, %arg5: memref<32x128xbf16, #tpu.memory_space<vmem>>, %arg6: memref<32x128xf32, #tpu.memory_space<vmem>>) attributes {dimension_semantics = [#tpu.dimension_semantics<parallel>, #tpu.dimension_semantics<parallel>, #tpu.dimension_semantics<arbitrary>], iteration_bounds = array<i64: 1, 1, 1>, scalar_prefetch = 0 : i64, scratch_operands = 1 : i64, tpu.core_type = #tpu.core_type<tc>, window_params = [{transform_indices = @transform_0, window_bounds = array<i64: 32, 32>}, {transform_indices = @transform_1, window_bounds = array<i64: 32, 128>}, {transform_indices = @transform_2, window_bounds = array<i64: 32, 128>}]} {
    %c0_i32 = arith.constant 0 : i32
    %0 = arith.cmpi eq, %arg2, %c0_i32 : i32
    %1 = arith.extui %0 : i1 to i32
    %c0_i32_0 = arith.constant 0 : i32
    %2 = arith.cmpi ne, %1, %c0_i32_0 : i32
    scf.if %2 {
      %cst_10 = arith.constant 0.000000e+00 : f32
      %12 = vector.broadcast %cst_10 : f32 to vector<32x128xf32>
      %c0_11 = arith.constant 0 : index
      %c0_12 = arith.constant 0 : index
      %13 = vector.load %arg6[%c0_11, %c0_12] : memref<32x128xf32, #tpu.memory_space<vmem>>, vector<32x128xf32>
      tpu.vector_store %arg6[%c0_11, %c0_12], %12 {strides = array<i32>} : memref<32x128xf32, #tpu.memory_space<vmem>>, vector<32x128xf32>,
    } else {
    }
    %c0 = arith.constant 0 : index
    %c0_1 = arith.constant 0 : index
    %3 = vector.load %arg6[%c0, %c0_1] : memref<32x128xf32, #tpu.memory_space<vmem>>, vector<32x128xf32>
    %c0_2 = arith.constant 0 : index
    %c0_3 = arith.constant 0 : index
    %4 = vector.load %arg3[%c0_2, %c0_3] : memref<32x32xbf16, #tpu.memory_space<vmem>>, vector<32x32xbf16>
    %c0_4 = arith.constant 0 : index
    %c0_5 = arith.constant 0 : index
    %5 = vector.load %arg4[%c0_4, %c0_5] : memref<32x128xbf16, #tpu.memory_space<vmem>>, vector<32x128xbf16>
    %cst = arith.constant dense<0.000000e+00> : vector<32x128xf32>
    %6 = tpu.matmul %4, %5, %cst {dimension_numbers = #tpu.dot_dimension_numbers<[1], [0], [0], [1], [0, 0, 1, 1], [], []>} : vector<32x32xbf16>, vector<32x128xbf16>, vector<32x128xf32> -> vector<32x128xf32>
    %7 = arith.addf %3, %6 : vector<32x128xf32>
    %c0_6 = arith.constant 0 : index
    %c0_7 = arith.constant 0 : index
    %8 = vector.load %arg6[%c0_6, %c0_7] : memref<32x128xf32, #tpu.memory_space<vmem>>, vector<32x128xf32>
    tpu.vector_store %arg6[%c0_6, %c0_7], %7 {strides = array<i32>} : memref<32x128xf32, #tpu.memory_space<vmem>>, vector<32x128xf32>,
    %c0_i32_8 = arith.constant 0 : i32
    %9 = arith.cmpi eq, %arg2, %c0_i32_8 : i32
    %10 = arith.extui %9 : i1 to i32
    %c0_i32_9 = arith.constant 0 : i32
    %11 = arith.cmpi ne, %10, %c0_i32_9 : i32
    scf.if %11 {
      %c0_10 = arith.constant 0 : index
      %c0_11 = arith.constant 0 : index
      %12 = vector.load %arg6[%c0_10, %c0_11] : memref<32x128xf32, #tpu.memory_space<vmem>>, vector<32x128xf32>
      %13 = arith.truncf %12 : vector<32x128xf32> to vector<32x128xbf16>
      %c0_12 = arith.constant 0 : index
      %c0_13 = arith.constant 0 : index
      %14 = vector.load %arg5[%c0_12, %c0_13] : memref<32x128xbf16, #tpu.memory_space<vmem>>, vector<32x128xbf16>
      tpu.vector_store %arg5[%c0_12, %c0_13], %13 {strides = array<i32>} : memref<32x128xbf16, #tpu.memory_space<vmem>>, vector<32x128xbf16>,
    } else {
    }
    return
  }
  func.func @transform_0(%arg0: i32, %arg1: i32, %arg2: i32) -> (i32, i32) {
    %c0_i32 = arith.constant 0 : i32
    return %arg0, %arg2 : i32, i32
  }
  func.func @transform_1(%arg0: i32, %arg1: i32, %arg2: i32) -> (i32, i32) {
    %c0_i32 = arith.constant 0 : i32
    return %arg2, %arg1 : i32, i32
  }
  func.func @transform_2(%arg0: i32, %arg1: i32, %arg2: i32) -> (i32, i32) {
    %c0_i32 = arith.constant 0 : i32
    return %arg0, %arg1 : i32, i32
  }
}

</mosaic_0001>

<llo_original>
// kernel: tpu_custom_call.1
$region0: #{tpu_custom_call.1}
  #allocation0 [shape = 'u32[]', space=smem, size = 0x4, offset = 0x4, fixed_abs, tag = 'smem constant byte address 0x4 - core index']
  #allocation1 [shape = 'u32[144,128]{1,0:T(1,128)}', space=vmem, size = 0x12000, scoped, tag = 'internal scratch']
  #allocation2 [shape = 'f32[32,128]{1,0:T(8,128)}', space=vmem, size = 0x4000, scoped, tag = 'scratch operand']
  %s0 = inlined_call_operand.hbm [shape: bf16[32,32], index: 0, kind: input, shape index: {}]
  %s1 = inlined_call_operand.hbm [shape: bf16[32,128], index: 1, kind: input, shape index: {}]
  %s2 = inlined_call_operand.hbm [shape: bf16[32,128], index: 2, kind: output, shape index: {}]
  %s3 = sld [smem:[#allocation0]]
  $region34: #{tpu_custom_call.1} parent=0
    _
  %s5 = ssub.s32 1, %s3
  %s6 = scalar_select 0, %s5, %s3
  $region1: #{tpu_custom_call.1} parent=0
    #allocation3 [shape = 'u8[8192]{0}', space=vmem, size = 0x2000, scoped, tag = 'input window, operand 0, single buffered']
    #allocation4 [shape = 's32[1]{0}', space=sflag, size = 0x4, scoped, tag = 'scoped memory for tpu_custom_call.1']
    #allocation5 [shape = 's32[1]{0}', space=sflag, size = 0x4, scoped, tag = 'scoped memory for tpu_custom_call.1']
    #allocation6 [shape = 'u8[8192]{0}', space=vmem, size = 0x2000, scoped, tag = 'input window, operand 1, single buffered']
    #allocation7 [shape = 's32[1]{0}', space=sflag, size = 0x4, scoped, tag = 'scoped memory for tpu_custom_call.1']
    #allocation8 [shape = 'u8[8192]{0}', space=vmem, size = 0x2000, scoped, tag = 'output window, operand 0, single buffered']
    %7 = vsyncpa [#allocation4], 0
    %8 = vsyncpa [#allocation7], 0
    %9 = vsyncpa [#allocation5], 0
    // Predicated region
    $region2: #{tpu_custom_call.1} parent=1 // pred_check
      _
    $region3: #{tpu_custom_call.1} parent=1 // pred_check_branch
      %11 = sbr.rel (0) target = $region5
    $region4: #{tpu_custom_call.1} parent=1 // pred_region
      %s13 = ssub.s32 256, 256
      %14 = vsyncadd [#allocation4], %s13
      %s15 = sshll.u32 [#allocation3], 4
      %s16 = int_to_ptr.vmem [resolvable:$true] %s15
      %21 = dma.hbm_to_vmem [thread:$0]  %s0, 256, %s16, [#allocation4], 64, 64, 4
    $region5: #{tpu_custom_call.1} parent=1 // pred_fallthru
      _
    // Predicated region
    $region6: #{tpu_custom_call.1} parent=1 // pred_check
      _
    $region7: #{tpu_custom_call.1} parent=1 // pred_check_branch
      %23 = sbr.rel (0) target = $region9
    $region8: #{tpu_custom_call.1} parent=1 // pred_region
      %s25 = ssub.s32 256, 256
      %26 = vsyncadd [#allocation7], %s25
      %s27 = sshll.u32 [#allocation6], 4
      %s28 = int_to_ptr.vmem [resolvable:$true] %s27
      %33 = dma.hbm_to_vmem [thread:$0]  %s1, 256, %s28, [#allocation7], 64, 64, 4
    $region9: #{tpu_custom_call.1} parent=1 // pred_fallthru
      _
    // Predicated region
    $region10: #{tpu_custom_call.1} parent=1 // pred_check
      _
    $region11: #{tpu_custom_call.1} parent=1 // pred_check_branch
      %35 = sbr.rel (0) target = $region13
    $region12: #{tpu_custom_call.1} parent=1 // pred_region
      %36 = dma.done [#allocation4], 256
    $region13: #{tpu_custom_call.1} parent=1 // pred_fallthru
      _
    // Predicated region
    $region14: #{tpu_custom_call.1} parent=1 // pred_check
      _
    $region15: #{tpu_custom_call.1} parent=1 // pred_check_branch
      %38 = sbr.rel (0) target = $region17
    $region16: #{tpu_custom_call.1} parent=1 // pred_region
      %39 = dma.done [#allocation7], 256
    $region17: #{tpu_custom_call.1} parent=1 // pred_fallthru
      _
    %p41 = scmp.eq.s32.totalorder 0, 0
    // Predicated region
    $region18: #{tpu_custom_call.1} parent=1 // pred_check
      %p42 = pneg %p41
    $region19: #{tpu_custom_call.1} parent=1 // pred_check_branch
      %44 = sbr.rel (%p42) target = $region21
    $region20: #{tpu_custom_call.1} parent=1 // pred_region
      %45 = vst [vmem:[#allocation2] sm:$0xff] 0.0
      %46 = vst [vmem:[#allocation2 + $0x8] sm:$0xff] 0.0
      %47 = vst [vmem:[#allocation2 + $0x10] sm:$0xff] 0.0
      %48 = vst [vmem:[#allocation2 + $0x18] sm:$0xff] 0.0
    $region21: #{tpu_custom_call.1} parent=1 // pred_fallthru
      _
    %v49 = vld [vmem:[#allocation2] sm:$0xff]
    %v50 = vld [vmem:[#allocation2 + $0x8] sm:$0xff]
    %v51 = vld [vmem:[#allocation2 + $0x10] sm:$0xff]
    %v52 = vld [vmem:[#allocation2 + $0x18] sm:$0xff]
    %v53 = vld [vmem:[#allocation3] sm:$0xf]
    %v54 = vld [vmem:[#allocation3 + $0x4] sm:$0xf]
    %v55 = vld [vmem:[#allocation3 + $0x8] sm:$0xf]
    %v56 = vld [vmem:[#allocation3 + $0xc] sm:$0xf]
    %v57 = vld [vmem:[#allocation6] sm:$0xf]
    %v58 = vld [vmem:[#allocation6 + $0x4] sm:$0xf]
    %v59 = vld [vmem:[#allocation6 + $0x8] sm:$0xf]
    %v60 = vld [vmem:[#allocation6 + $0xc] sm:$0xf]
    %v65 = vunpack.c.l.b16 %v53
    %v66 = vunpack.c.l.b16 %v54
    %v67 = vunpack.c.l.b16 %v55
    %v68 = vunpack.c.l.b16 %v56
    %v69 = vpack.c.b16 %v66, %v65
    %v70 = vpack.c.b16 %v68, %v67
    %v75 = vunpack.c.l.b16 %v57
    %v76 = vunpack.c.l.b16 %v58
    %v77 = vunpack.c.l.b16 %v59
    %v78 = vunpack.c.l.b16 %v60
    %v79 = vpack.c.b16 %v76, %v75
    %v80 = vpack.c.b16 %v78, %v77
    %vm83 = vcmask 261120
    %v85 = vsel %vm83, %v69, 0
    %v88 = vsel %vm83, %v70, 0
    %90 = vmatprep.subr.bf16.mxu0 0
    %91 = vmatpush1.bf16.msra.mxu0 0
    %92 = vmatprep.subr.bf16.mxu0 0
    %93 = vmatpush1.bf16.msra.mxu0 0
    %94 = vmatprep.subr.bf16.mxu0 0
    %95 = vmatpush1.bf16.msra.mxu0 0
    %96 = vmatprep.subr.bf16.mxu0 0
    %97 = vmatpush1.bf16.msra.mxu0 0
    %98 = vmatprep.subr.bf16.mxu0 0
    %99 = vmatpush1.bf16.msra.mxu0 0
    %100 = vmatprep.subr.bf16.mxu0 0
    %101 = vmatpush1.bf16.msra.mxu0 0
    %102 = vmatprep.subr.bf16.mxu0 0
    %103 = vmatpush1.bf16.msra.mxu0 %v80
    %104 = vmatprep.subr.bf16.mxu0 0
    %105 = vmatpush1.bf16.msra.mxu0 %v79
    %106 = vmatprep.subr.bf16.mxu0 0
    %107 = vmatpush2.bf16.msra.mxu0 0
    %108 = vmatprep.subr.bf16.mxu0 0
    %109 = vmatpush2.bf16.msra.mxu0 0
    %110 = vmatprep.subr.bf16.mxu0 0
    %111 = vmatpush2.bf16.msra.mxu0 0
    %112 = vmatprep.subr.bf16.mxu0 0
    %113 = vmatpush2.bf16.msra.mxu0 0
    %114 = vmatprep.subr.bf16.mxu0 0
    %115 = vmatpush2.bf16.msra.mxu0 0
    %116 = vmatprep.subr.bf16.mxu0 0
    %117 = vmatpush2.bf16.msra.mxu0 0
    %118 = vmatprep.subr.bf16.mxu0 0
    %119 = vmatpush2.bf16.msra.mxu0 0
    %120 = vmatprep.subr.bf16.mxu0 0
    %121 = vmatpush2.bf16.msra.mxu0 0
    %122 = vmatprep.mubr.bf16.mxu0 0
    %123 = vmatmul.mubr.bf16.gmra.mxu0 %v85
    %v124 = vpop.f32.mrf.mxu0
    %v125 = vadd.f32 0.0, %v124
    %v126 = vpop.f32.mrf.mxu0
    %v127 = vpop.f32.mrf.mxu0
    %v128 = vadd.f32 0.0, %v127
    %v129 = vpop.f32.mrf.mxu0
    %130 = vmatprep.mubr.bf16.mxu0 0
    %131 = vmatmul.mubr.bf16.gmra.mxu0 %v88
    %v132 = vpop.f32.mrf.mxu0
    %v133 = vadd.f32 0.0, %v132
    %v134 = vpop.f32.mrf.mxu0
    %v135 = vpop.f32.mrf.mxu0
    %v136 = vadd.f32 0.0, %v135
    %v137 = vpop.f32.mrf.mxu0
    %138 = vdwg.mxu0
    %v139 = vadd.f32 %v49, %v125
    %v140 = vadd.f32 %v50, %v128
    %v141 = vadd.f32 %v51, %v133
    %v142 = vadd.f32 %v52, %v136
    %143 = vst [vmem:[#allocation2] sm:$0xff] %v139
    %144 = vst [vmem:[#allocation2 + $0x8] sm:$0xff] %v140
    %145 = vst [vmem:[#allocation2 + $0x10] sm:$0xff] %v141
    %146 = vst [vmem:[#allocation2 + $0x18] sm:$0xff] %v142
    // Predicated region
    $region22: #{tpu_custom_call.1} parent=1 // pred_check
      %p147 = pneg %p41
    $region23: #{tpu_custom_call.1} parent=1 // pred_check_branch
      %149 = sbr.rel (%p147) target = $region25
    $region24: #{tpu_custom_call.1} parent=1 // pred_region
      %v150 = vld [vmem:[#allocation2] sm:$0xff]
      %v151 = vld [vmem:[#allocation2 + $0x8] sm:$0xff]
      %v152 = vld [vmem:[#allocation2 + $0x10] sm:$0xff]
      %v153 = vld [vmem:[#allocation2 + $0x18] sm:$0xff]
      %v154 = vpack.c.bf16 %v151, %v150
      %v155 = vpack.c.bf16 %v153, %v152
      %v158 = vunpack.c.l.b16 %v154
      %v159 = vunpack.c.h.b16 %v154
      %v160 = vunpack.c.l.b16 %v155
      %v161 = vunpack.c.h.b16 %v155
      %v162 = vpack.c.b16 %v158, %v158
      %v163 = vpack.c.b16 %v159, %v159
      %v164 = vpack.c.b16 %v160, %v160
      %v165 = vpack.c.b16 %v161, %v161
      %170 = vst [vmem:[#allocation8] sm:$0xf] %v162
      %171 = vst [vmem:[#allocation8 + $0x4] sm:$0xf] %v163
      %172 = vst [vmem:[#allocation8 + $0x8] sm:$0xf] %v164
      %173 = vst [vmem:[#allocation8 + $0xc] sm:$0xf] %v165
    $region25: #{tpu_custom_call.1} parent=1 // pred_fallthru
      _
    // Predicated region
    $region26: #{tpu_custom_call.1} parent=1 // pred_check
      _
    $region27: #{tpu_custom_call.1} parent=1 // pred_check_branch
      %175 = sbr.rel (0) target = $region29
    $region28: #{tpu_custom_call.1} parent=1 // pred_region
      %s177 = ssub.s32 256, 256
      %178 = vsyncadd [#allocation5], %s177
      %s179 = sshll.u32 [#allocation8], 4
      %s180 = int_to_ptr.vmem [resolvable:$true] %s179
      %185 = dma.vmem_to_hbm [thread:$0]  %s180, 256, %s2, [#allocation5], 64, 64, 4
    $region29: #{tpu_custom_call.1} parent=1 // pred_fallthru
      _
    // Predicated region
    $region30: #{tpu_custom_call.1} parent=1 // pred_check
      _
    $region31: #{tpu_custom_call.1} parent=1 // pred_check_branch
      %187 = sbr.rel (0) target = $region33
    $region32: #{tpu_custom_call.1} parent=1 // pred_region
      %188 = dma.done [#allocation5], 256
    $region33: #{tpu_custom_call.1} parent=1 // pred_fallthru
      _
    %189 = vsyncpa [#allocation4], 1
    %190 = vsyncpa [#allocation7], 1
    %191 = vsyncpa [#allocation5], 1

</llo_original>
